<compile_context>
chip_gen: v7x
topology: tpu7x:2x2x1
jax: 0.10.0
libtpu: 0.0.40
codegen_flags: <defaults>
</compile_context>

<pallas_src>
import functools

import jax
import jax.numpy as jnp
from jax.experimental import pallas as pl
from jax.experimental.pallas import tpu as pltpu


# ----------------------------------------------------------------------------
# Pallas kernel
# ----------------------------------------------------------------------------
def _fold_kernel(x_ref, o_ref, accp_ref, *, ksize):
    """x_ref: (gb, K^2, H, W) raw input block; o_ref: (gb, 1, H, W) output block;
    accp_ref: (gb, 1, H+K-1, W+K-1) f32 VMEM scratch (padded accumulator).

        accp[:, :, dy:dy+H, dx:dx+W] += x[:, dy*K+dx]        for all (dy, dx)
        out = accp[:, :, p:p+H, p:p+W]                       (p = K // 2)

    All slice bounds are compile-time constants; the halo is handled entirely in VMEM,
    so no separate HBM pad pass and no out-of-range bookkeeping is needed.
    """
    _, k2, H, W = x_ref.shape
    pad = ksize // 2
    accp_ref[...] = jnp.zeros_like(accp_ref)
    for k in range(k2):  # static unroll: K^2 shifted VPU adds into the padded canvas
        dy, dx = k // ksize, k % ksize
        accp_ref[:, :, dy:dy + H, dx:dx + W] += (
            x_ref[:, k:k + 1, :, :].astype(jnp.float32))
    o_ref[...] = accp_ref[:, :, pad:pad + H, pad:pad + W].astype(o_ref.dtype)


# ----------------------------------------------------------------------------
# Wrapper
# ----------------------------------------------------------------------------
def fold(x, kernel_size=3, *, vmem_budget_bytes=12 << 20):
    """x: (B, kernel_size**2, H, W) -> (B, 1, H, W); matches Fold.forward (odd K)."""
    B, k2, H, W = x.shape
    assert k2 == kernel_size * kernel_size, "channel dim must equal kernel_size**2"
    assert kernel_size % 2 == 1, "even kernel_size changes conv_transpose2d output size"
    Hp, Wp = H + kernel_size - 1, W + kernel_size - 1

    # Per-image working set: double-buffered input + output blocks plus the f32 padded
    # accumulator scratch (single-buffered). Budget kept under the v5e 16 MiB scoped
    # default (and well under v6e/v7x defaults), leaving slack for slice temporaries.
    itemsize = jnp.dtype(x.dtype).itemsize
    bytes_per_img = (2 * k2 * H * W + 2 * H * W) * itemsize + Hp * Wp * 4
    gb = max(1, min(B, vmem_budget_bytes // max(bytes_per_img, 1)))
    if B >= 2:
        gb = min(gb, pl.cdiv(B, 2))   # >= 2 grid steps so v7x's two TCs both get work
    grid = (pl.cdiv(B, gb),)          # ragged last block: OOB output writes are dropped

    return pl.pallas_call(
        functools.partial(_fold_kernel, ksize=kernel_size),
        out_shape=jax.ShapeDtypeStruct((B, 1, H, W), x.dtype),
        grid=grid,
        in_specs=[pl.BlockSpec((gb, k2, H, W), lambda i: (i, 0, 0, 0))],
        out_specs=pl.BlockSpec((gb, 1, H, W), lambda i: (i, 0, 0, 0)),
        scratch_shapes=[pltpu.VMEM((gb, 1, Hp, Wp), jnp.float32)],
        compiler_params=pltpu.CompilerParams(dimension_semantics=("parallel",)),
    )(x)


# ----------------------------------------------------------------------------
# Pure-JAX reference (scatter-add formulation)
# ----------------------------------------------------------------------------
def fold_reference(x, kernel_size=3):
    B, k2, H, W = x.shape
    pad = kernel_size // 2
    out = jnp.zeros((B, 1, H + 2 * pad, W + 2 * pad), x.dtype)
    for k in range(k2):
        dy, dx = k // kernel_size, k % kernel_size
        out = out.at[:, 0, dy:dy + H, dx:dx + W].add(x[:, k])
    return out[:, :, pad:pad + H, pad:pad + W]


if __name__ == "__main__":
    key = jax.random.PRNGKey(0)
    B, H, W = 2, 16, 16
    ksize = 3
    x = jax.random.normal(key, (B, ksize * ksize, H, W), jnp.float32)

    fold_fn = jax.jit(functools.partial(fold, kernel_size=ksize))
    out = fold_fn(x)
    jax.block_until_ready(out)

    ref = fold_reference(x, ksize)
    assert out.shape == (B, 1, H, W) and out.dtype == jnp.float32
    assert bool(jnp.all(jnp.isfinite(out)))
    assert bool(jnp.allclose(out, ref, atol=1e-5, rtol=1e-5))
    print("KERNEL_OK")
</pallas_src>

<mosaic_0001>
module attributes {stable_mosaic.version = 11 : i64} {
  func.func @_fold_kernel(%arg0: i32, %arg1: memref<1x9x16x16xf32, #tpu.memory_space<vmem>>, %arg2: memref<1x1x16x16xf32, #tpu.memory_space<vmem>>, %arg3: memref<1x1x18x18xf32, #tpu.memory_space<vmem>>) attributes {dimension_semantics = [#tpu.dimension_semantics<parallel>], iteration_bounds = array<i64: 2>, scalar_prefetch = 0 : i64, scratch_operands = 1 : i64, tpu.core_type = #tpu.core_type<tc>, window_params = [{transform_indices = @transform_0, window_bounds = array<i64: 1, 9, 16, 16>}, {transform_indices = @transform_1, window_bounds = array<i64: 1, 1, 16, 16>}]} {
    %cst = arith.constant 0.000000e+00 : f32
    %0 = vector.broadcast %cst : f32 to vector<1x1x18x18xf32>
    %c0 = arith.constant 0 : index
    %c0_0 = arith.constant 0 : index
    %c0_1 = arith.constant 0 : index
    %c0_2 = arith.constant 0 : index
    %1 = vector.load %arg3[%c0, %c0_0, %c0_1, %c0_2] : memref<1x1x18x18xf32, #tpu.memory_space<vmem>>, vector<1x1x18x18xf32>
    tpu.vector_store %arg3[%c0, %c0_0, %c0_1, %c0_2], %0 {strides = array<i32>} : memref<1x1x18x18xf32, #tpu.memory_space<vmem>>, vector<1x1x18x18xf32>,
    %c0_3 = arith.constant 0 : index
    %c0_4 = arith.constant 0 : index
    %c0_5 = arith.constant 0 : index
    %c0_6 = arith.constant 0 : index
    %2 = vector.load %arg3[%c0_3, %c0_4, %c0_5, %c0_6] : memref<1x1x18x18xf32, #tpu.memory_space<vmem>>, vector<1x1x16x16xf32>
    %c0_7 = arith.constant 0 : index
    %c0_8 = arith.constant 0 : index
    %c0_9 = arith.constant 0 : index
    %c0_10 = arith.constant 0 : index
    %3 = vector.load %arg1[%c0_7, %c0_8, %c0_9, %c0_10] : memref<1x9x16x16xf32, #tpu.memory_space<vmem>>, vector<1x1x16x16xf32>
    %4 = arith.addf %2, %3 : vector<1x1x16x16xf32>
    %c0_11 = arith.constant 0 : index
    %c0_12 = arith.constant 0 : index
    %c0_13 = arith.constant 0 : index
    %c0_14 = arith.constant 0 : index
    %5 = vector.load %arg3[%c0_11, %c0_12, %c0_13, %c0_14] : memref<1x1x18x18xf32, #tpu.memory_space<vmem>>, vector<1x1x16x16xf32>
    tpu.vector_store %arg3[%c0_11, %c0_12, %c0_13, %c0_14], %4 {strides = array<i32>} : memref<1x1x18x18xf32, #tpu.memory_space<vmem>>, vector<1x1x16x16xf32>,
    %c0_15 = arith.constant 0 : index
    %c0_16 = arith.constant 0 : index
    %c0_17 = arith.constant 0 : index
    %c1 = arith.constant 1 : index
    %6 = vector.load %arg3[%c0_15, %c0_16, %c0_17, %c1] : memref<1x1x18x18xf32, #tpu.memory_space<vmem>>, vector<1x1x16x16xf32>
    %c0_18 = arith.constant 0 : index
    %c1_19 = arith.constant 1 : index
    %c0_20 = arith.constant 0 : index
    %c0_21 = arith.constant 0 : index
    %7 = vector.load %arg1[%c0_18, %c1_19, %c0_20, %c0_21] : memref<1x9x16x16xf32, #tpu.memory_space<vmem>>, vector<1x1x16x16xf32>
    %8 = arith.addf %6, %7 : vector<1x1x16x16xf32>
    %c0_22 = arith.constant 0 : index
    %c0_23 = arith.constant 0 : index
    %c0_24 = arith.constant 0 : index
    %c1_25 = arith.constant 1 : index
    %9 = vector.load %arg3[%c0_22, %c0_23, %c0_24, %c1_25] : memref<1x1x18x18xf32, #tpu.memory_space<vmem>>, vector<1x1x16x16xf32>
    tpu.vector_store %arg3[%c0_22, %c0_23, %c0_24, %c1_25], %8 {strides = array<i32>} : memref<1x1x18x18xf32, #tpu.memory_space<vmem>>, vector<1x1x16x16xf32>,
    %c0_26 = arith.constant 0 : index
    %c0_27 = arith.constant 0 : index
    %c0_28 = arith.constant 0 : index
    %c2 = arith.constant 2 : index
    %10 = vector.load %arg3[%c0_26, %c0_27, %c0_28, %c2] : memref<1x1x18x18xf32, #tpu.memory_space<vmem>>, vector<1x1x16x16xf32>
    %c0_29 = arith.constant 0 : index
    %c2_30 = arith.constant 2 : index
    %c0_31 = arith.constant 0 : index
    %c0_32 = arith.constant 0 : index
    %11 = vector.load %arg1[%c0_29, %c2_30, %c0_31, %c0_32] : memref<1x9x16x16xf32, #tpu.memory_space<vmem>>, vector<1x1x16x16xf32>
    %12 = arith.addf %10, %11 : vector<1x1x16x16xf32>
    %c0_33 = arith.constant 0 : index
    %c0_34 = arith.constant 0 : index
    %c0_35 = arith.constant 0 : index
    %c2_36 = arith.constant 2 : index
    %13 = vector.load %arg3[%c0_33, %c0_34, %c0_35, %c2_36] : memref<1x1x18x18xf32, #tpu.memory_space<vmem>>, vector<1x1x16x16xf32>
    tpu.vector_store %arg3[%c0_33, %c0_34, %c0_35, %c2_36], %12 {strides = array<i32>} : memref<1x1x18x18xf32, #tpu.memory_space<vmem>>, vector<1x1x16x16xf32>,
    %c0_37 = arith.constant 0 : index
    %c0_38 = arith.constant 0 : index
    %c1_39 = arith.constant 1 : index
    %c0_40 = arith.constant 0 : index
    %14 = vector.load %arg3[%c0_37, %c0_38, %c1_39, %c0_40] : memref<1x1x18x18xf32, #tpu.memory_space<vmem>>, vector<1x1x16x16xf32>
    %c0_41 = arith.constant 0 : index
    %c3 = arith.constant 3 : index
    %c0_42 = arith.constant 0 : index
    %c0_43 = arith.constant 0 : index
    %15 = vector.load %arg1[%c0_41, %c3, %c0_42, %c0_43] : memref<1x9x16x16xf32, #tpu.memory_space<vmem>>, vector<1x1x16x16xf32>
    %16 = arith.addf %14, %15 : vector<1x1x16x16xf32>
    %c0_44 = arith.constant 0 : index
    %c0_45 = arith.constant 0 : index
    %c1_46 = arith.constant 1 : index
    %c0_47 = arith.constant 0 : index
    %17 = vector.load %arg3[%c0_44, %c0_45, %c1_46, %c0_47] : memref<1x1x18x18xf32, #tpu.memory_space<vmem>>, vector<1x1x16x16xf32>
    tpu.vector_store %arg3[%c0_44, %c0_45, %c1_46, %c0_47], %16 {strides = array<i32>} : memref<1x1x18x18xf32, #tpu.memory_space<vmem>>, vector<1x1x16x16xf32>,
    %c0_48 = arith.constant 0 : index
    %c0_49 = arith.constant 0 : index
    %c1_50 = arith.constant 1 : index
    %c1_51 = arith.constant 1 : index
    %18 = vector.load %arg3[%c0_48, %c0_49, %c1_50, %c1_51] : memref<1x1x18x18xf32, #tpu.memory_space<vmem>>, vector<1x1x16x16xf32>
    %c0_52 = arith.constant 0 : index
    %c4 = arith.constant 4 : index
    %c0_53 = arith.constant 0 : index
    %c0_54 = arith.constant 0 : index
    %19 = vector.load %arg1[%c0_52, %c4, %c0_53, %c0_54] : memref<1x9x16x16xf32, #tpu.memory_space<vmem>>, vector<1x1x16x16xf32>
    %20 = arith.addf %18, %19 : vector<1x1x16x16xf32>
    %c0_55 = arith.constant 0 : index
    %c0_56 = arith.constant 0 : index
    %c1_57 = arith.constant 1 : index
    %c1_58 = arith.constant 1 : index
    %21 = vector.load %arg3[%c0_55, %c0_56, %c1_57, %c1_58] : memref<1x1x18x18xf32, #tpu.memory_space<vmem>>, vector<1x1x16x16xf32>
    tpu.vector_store %arg3[%c0_55, %c0_56, %c1_57, %c1_58], %20 {strides = array<i32>} : memref<1x1x18x18xf32, #tpu.memory_space<vmem>>, vector<1x1x16x16xf32>,
    %c0_59 = arith.constant 0 : index
    %c0_60 = arith.constant 0 : index
    %c1_61 = arith.constant 1 : index
    %c2_62 = arith.constant 2 : index
    %22 = vector.load %arg3[%c0_59, %c0_60, %c1_61, %c2_62] : memref<1x1x18x18xf32, #tpu.memory_space<vmem>>, vector<1x1x16x16xf32>
    %c0_63 = arith.constant 0 : index
    %c5 = arith.constant 5 : index
    %c0_64 = arith.constant 0 : index
    %c0_65 = arith.constant 0 : index
    %23 = vector.load %arg1[%c0_63, %c5, %c0_64, %c0_65] : memref<1x9x16x16xf32, #tpu.memory_space<vmem>>, vector<1x1x16x16xf32>
    %24 = arith.addf %22, %23 : vector<1x1x16x16xf32>
    %c0_66 = arith.constant 0 : index
    %c0_67 = arith.constant 0 : index
    %c1_68 = arith.constant 1 : index
    %c2_69 = arith.constant 2 : index
    %25 = vector.load %arg3[%c0_66, %c0_67, %c1_68, %c2_69] : memref<1x1x18x18xf32, #tpu.memory_space<vmem>>, vector<1x1x16x16xf32>
    tpu.vector_store %arg3[%c0_66, %c0_67, %c1_68, %c2_69], %24 {strides = array<i32>} : memref<1x1x18x18xf32, #tpu.memory_space<vmem>>, vector<1x1x16x16xf32>,
    %c0_70 = arith.constant 0 : index
    %c0_71 = arith.constant 0 : index
    %c2_72 = arith.constant 2 : index
    %c0_73 = arith.constant 0 : index
    %26 = vector.load %arg3[%c0_70, %c0_71, %c2_72, %c0_73] : memref<1x1x18x18xf32, #tpu.memory_space<vmem>>, vector<1x1x16x16xf32>
    %c0_74 = arith.constant 0 : index
    %c6 = arith.constant 6 : index
    %c0_75 = arith.constant 0 : index
    %c0_76 = arith.constant 0 : index
    %27 = vector.load %arg1[%c0_74, %c6, %c0_75, %c0_76] : memref<1x9x16x16xf32, #tpu.memory_space<vmem>>, vector<1x1x16x16xf32>
    %28 = arith.addf %26, %27 : vector<1x1x16x16xf32>
    %c0_77 = arith.constant 0 : index
    %c0_78 = arith.constant 0 : index
    %c2_79 = arith.constant 2 : index
    %c0_80 = arith.constant 0 : index
    %29 = vector.load %arg3[%c0_77, %c0_78, %c2_79, %c0_80] : memref<1x1x18x18xf32, #tpu.memory_space<vmem>>, vector<1x1x16x16xf32>
    tpu.vector_store %arg3[%c0_77, %c0_78, %c2_79, %c0_80], %28 {strides = array<i32>} : memref<1x1x18x18xf32, #tpu.memory_space<vmem>>, vector<1x1x16x16xf32>,
    %c0_81 = arith.constant 0 : index
    %c0_82 = arith.constant 0 : index
    %c2_83 = arith.constant 2 : index
    %c1_84 = arith.constant 1 : index
    %30 = vector.load %arg3[%c0_81, %c0_82, %c2_83, %c1_84] : memref<1x1x18x18xf32, #tpu.memory_space<vmem>>, vector<1x1x16x16xf32>
    %c0_85 = arith.constant 0 : index
    %c7 = arith.constant 7 : index
    %c0_86 = arith.constant 0 : index
    %c0_87 = arith.constant 0 : index
    %31 = vector.load %arg1[%c0_85, %c7, %c0_86, %c0_87] : memref<1x9x16x16xf32, #tpu.memory_space<vmem>>, vector<1x1x16x16xf32>
    %32 = arith.addf %30, %31 : vector<1x1x16x16xf32>
    %c0_88 = arith.constant 0 : index
    %c0_89 = arith.constant 0 : index
    %c2_90 = arith.constant 2 : index
    %c1_91 = arith.constant 1 : index
    %33 = vector.load %arg3[%c0_88, %c0_89, %c2_90, %c1_91] : memref<1x1x18x18xf32, #tpu.memory_space<vmem>>, vector<1x1x16x16xf32>
    tpu.vector_store %arg3[%c0_88, %c0_89, %c2_90, %c1_91], %32 {strides = array<i32>} : memref<1x1x18x18xf32, #tpu.memory_space<vmem>>, vector<1x1x16x16xf32>,
    %c0_92 = arith.constant 0 : index
    %c0_93 = arith.constant 0 : index
    %c2_94 = arith.constant 2 : index
    %c2_95 = arith.constant 2 : index
    %34 = vector.load %arg3[%c0_92, %c0_93, %c2_94, %c2_95] : memref<1x1x18x18xf32, #tpu.memory_space<vmem>>, vector<1x1x16x16xf32>
    %c0_96 = arith.constant 0 : index
    %c8 = arith.constant 8 : index
    %c0_97 = arith.constant 0 : index
    %c0_98 = arith.constant 0 : index
    %35 = vector.load %arg1[%c0_96, %c8, %c0_97, %c0_98] : memref<1x9x16x16xf32, #tpu.memory_space<vmem>>, vector<1x1x16x16xf32>
    %36 = arith.addf %34, %35 : vector<1x1x16x16xf32>
    %c0_99 = arith.constant 0 : index
    %c0_100 = arith.constant 0 : index
    %c2_101 = arith.constant 2 : index
    %c2_102 = arith.constant 2 : index
    %37 = vector.load %arg3[%c0_99, %c0_100, %c2_101, %c2_102] : memref<1x1x18x18xf32, #tpu.memory_space<vmem>>, vector<1x1x16x16xf32>
    tpu.vector_store %arg3[%c0_99, %c0_100, %c2_101, %c2_102], %36 {strides = array<i32>} : memref<1x1x18x18xf32, #tpu.memory_space<vmem>>, vector<1x1x16x16xf32>,
    %c0_103 = arith.constant 0 : index
    %c0_104 = arith.constant 0 : index
    %c1_105 = arith.constant 1 : index
    %c1_106 = arith.constant 1 : index
    %38 = vector.load %arg3[%c0_103, %c0_104, %c1_105, %c1_106] : memref<1x1x18x18xf32, #tpu.memory_space<vmem>>, vector<1x1x16x16xf32>
    %c0_107 = arith.constant 0 : index
    %c0_108 = arith.constant 0 : index
    %c0_109 = arith.constant 0 : index
    %c0_110 = arith.constant 0 : index
    %39 = vector.load %arg2[%c0_107, %c0_108, %c0_109, %c0_110] : memref<1x1x16x16xf32, #tpu.memory_space<vmem>>, vector<1x1x16x16xf32>
    tpu.vector_store %arg2[%c0_107, %c0_108, %c0_109, %c0_110], %38 {strides = array<i32>} : memref<1x1x16x16xf32, #tpu.memory_space<vmem>>, vector<1x1x16x16xf32>,
    return
  }
  func.func @transform_0(%arg0: i32) -> (i32, i32, i32, i32) {
    %c0_i32 = arith.constant 0 : i32
    %c0_i32_0 = arith.constant 0 : i32
    %c0_i32_1 = arith.constant 0 : i32
    %c0_i32_2 = arith.constant 0 : i32
    return %arg0, %c0_i32, %c0_i32_0, %c0_i32_1 : i32, i32, i32, i32
  }
  func.func @transform_1(%arg0: i32) -> (i32, i32, i32, i32) {
    %c0_i32 = arith.constant 0 : i32
    %c0_i32_0 = arith.constant 0 : i32
    %c0_i32_1 = arith.constant 0 : i32
    %c0_i32_2 = arith.constant 0 : i32
    return %arg0, %c0_i32, %c0_i32_0, %c0_i32_1 : i32, i32, i32, i32
  }
}

</mosaic_0001>

<llo_original>
// kernel: fold.1
$region0: #{fold.1}
  #allocation0 [shape = 'u32[]', space=smem, size = 0x4, offset = 0x4, fixed_abs, tag = 'smem constant byte address 0x4 - core index']
  #allocation1 [shape = 'u32[144,128]{1,0:T(1,128)}', space=vmem, size = 0x12000, scoped, tag = 'internal scratch']
  #allocation2 [shape = 'f32[1,1,18,18]{3,2,1,0:T(8,128)}', space=vmem, size = 0x3000, scoped, tag = 'scratch operand']
  %s0 = inlined_call_operand.hbm [shape: f32[2,9,16,16], index: 0, kind: input, shape index: {}]
  %s1 = inlined_call_operand.hbm [shape: f32[2,1,16,16], index: 1, kind: output, shape index: {}]
  %s2 = sld [smem:[#allocation0]]
  $region41: #{fold.1} parent=0
    _
  %s4 = ssub.s32 1, %s2
  %s5 = scalar_select 0, %s4, %s2
  $region1: #{fold.1} parent=0
    #allocation3 [shape = 'u8[147456]{0}', space=vmem, size = 0x24000, scoped, tag = 'input window, operand 0']
    #allocation4 [shape = 's32[2]{0}', space=sflag, size = 0x8, scoped, tag = 'scoped memory for fold.1']
    #allocation5 [shape = 's32[2]{0}', space=sflag, size = 0x8, scoped, tag = 'scoped memory for fold.1']
    #allocation6 [shape = 'u8[16384]{0}', space=vmem, size = 0x4000, scoped, tag = 'output window, operand 0']
    %6 = vsyncpa [#allocation4], 0
    %s7 = scalar_lea.sflag [#allocation4], 1
    %8 = vsyncpa %s7, 0
    %9 = vsyncpa [#allocation5], 0
    %s10 = scalar_lea.sflag [#allocation5], 1
    %11 = vsyncpa %s10, 0
    loop: start=0, step=1, limit=4
    $region2: #{fold.1} parent=1 // loop_pre_header
      _
    $region3: #{fold.1} parent=1 // loop_header
      %s13 = sphi 0, %s17
      %p14 = scmp.ge.s32.totalorder %s13, 4
      %s23 = sphi 0, %s25
      %s26 = sphi 0, %s23
      %s27 = sphi 0, %s26
      %s43 = sphi 0, %s27
      %s49 = sphi 0, %s51
      %s52 = sphi 0, %s49
      %s53 = sphi 0, %s52
      %s69 = sphi 0, %s53
    $region4: #{fold.1} parent=1 // loop_header_branch
      %16 = sbr.rel (%p14) target = $region8
    $region5: #{fold.1} parent=1 // loop_body
      %s18 = ssub.s32 %s13, 1
      %s19 = ssub.s32 %s13, 2
      %s20 = sadd.s32 %s13, 1
      %s21 = ssub.s32 %s13, %s20
      %p22 = scmp.eq.s32.totalorder %s21, 0
      %s24 = sadd.s32 %s23, 1
      %s25 = scalar_select %p22, %s23, %s24
      %p28 = pneg %p22
      %p29 = scmp.eq.s32.totalorder %s13, 1
      %p30 = por %p28, %p29
      %p31 = scmp.ne.s32.totalorder %s23, %s26
      %p32 = scmp.eq.s32.totalorder %s13, 0
      %p33 = por %p31, %p32
      %p34 = scmp.ne.s32.totalorder %s23, %s26
      %p35 = scmp.eq.s32.totalorder %s18, 1
      %p36 = por %p34, %p35
      %p37 = scmp.ne.s32.totalorder %s26, %s27
      %p38 = scmp.eq.s32.totalorder %s18, 0
      %p39 = por %p37, %p38
      %p40 = scmp.ne.s32.totalorder %s26, %s27
      %p41 = scmp.eq.s32.totalorder %s19, 1
      %p42 = por %p40, %p41
      %p44 = scmp.ne.s32.totalorder %s27, %s43
      %p45 = scmp.eq.s32.totalorder %s19, 0
      %p46 = por %p44, %p45
      %s47 = ssub.s32 %s13, %s20
      %p48 = scmp.eq.s32.totalorder %s47, 0
      %s50 = sadd.s32 %s49, 1
      %s51 = scalar_select %p48, %s49, %s50
      %p54 = pneg %p48
      %p55 = scmp.eq.s32.totalorder %s13, 1
      %p56 = por %p54, %p55
      %p57 = scmp.ne.s32.totalorder %s49, %s52
      %p58 = scmp.eq.s32.totalorder %s13, 0
      %p59 = por %p57, %p58
      %p60 = scmp.ne.s32.totalorder %s49, %s52
      %p61 = scmp.eq.s32.totalorder %s18, 1
      %p62 = por %p60, %p61
      %p63 = scmp.ne.s32.totalorder %s52, %s53
      %p64 = scmp.eq.s32.totalorder %s18, 0
      %p65 = por %p63, %p64
      %p66 = scmp.ne.s32.totalorder %s52, %s53
      %p67 = scmp.eq.s32.totalorder %s19, 1
      %p68 = por %p66, %p67
      %p70 = scmp.ne.s32.totalorder %s53, %s69
      %p71 = scmp.eq.s32.totalorder %s19, 0
      %p72 = por %p70, %p71
      %p73 = scmp.le.s32.totalorder 1, %s13
      %p74 = scmp.lt.s32.totalorder %s13, 3
      %p75 = pnand %p73, %p74
      %p76 = pneg %p75
      // Predicated region
      $region9: #{fold.1} parent=5 // pred_check
        _
      $region10: #{fold.1} parent=5 // pred_check_branch
        %78 = sbr.rel (%p75) target = $region12
      $region11: #{fold.1} parent=5 // pred_region
        %s79 = ssub.s32 %s13, 1
      $region12: #{fold.1} parent=5 // pred_fallthru
        _
      %p80 = scmp.lt.s32.totalorder %s13, 2
      // Predicated region
      $region13: #{fold.1} parent=5 // pred_check
        %p81 = pneg %p80
      $region14: #{fold.1} parent=5 // pred_check_branch
        %83 = sbr.rel (%p81) target = $region16
      $region15: #{fold.1} parent=5 // pred_region
        // Predicated region
        $region17: #{fold.1} parent=15 // pred_check
          %p84 = pneg %p33
        $region18: #{fold.1} parent=15 // pred_check_branch
          %86 = sbr.rel (%p84) target = $region20
        $region19: #{fold.1} parent=15 // pred_region
          %s87 = sand.u32 %s23, 1
          %s88 = scalar_lea.sflag [#allocation4], %s87
          %s89 = sand.u32 %s23, 1
          %s90 = smul.addr %s89, 144
          %s91 = scalar_lea.vmem [#allocation3], %s90
          %s93 = ssub.s32 2304, 2304
          %94 = vsyncadd %s88, %s93
          %s95 = smul.addr %s13, 18
          %s96 = smul.addr %s95, 128
          %s97 = scalar_lea.hbm %s0, %s96
          %s98 = sshll.u32 %s91, 4
          %s99 = int_to_ptr.vmem [resolvable:$true] %s98
          %104 = dma.hbm_to_vmem [thread:$0]  %s97, 2304, %s99, %s88, 128, 128, 8
        $region20: #{fold.1} parent=15 // pred_fallthru
          _
      $region16: #{fold.1} parent=5 // pred_fallthru
        _
      %p105 = scmp.le.s32.totalorder 1, %s13
      %p106 = scmp.lt.s32.totalorder %s13, 3
      %p107 = pnand %p105, %p106
      %p108 = pneg %p107
      // Predicated region
      $region21: #{fold.1} parent=5 // pred_check
        _
      $region22: #{fold.1} parent=5 // pred_check_branch
        %110 = sbr.rel (%p107) target = $region24
      $region23: #{fold.1} parent=5 // pred_region
        %s111 = ssub.s32 %s13, 1
        %s112 = sand.u32 %s26, 1
        %s113 = scalar_lea.sflag [#allocation4], %s112
        %s114 = sand.u32 %s26, 1
        %s115 = smul.addr %s114, 144
        %s116 = scalar_lea.vmem [#allocation3], %s115
        // Predicated region
        $region25: #{fold.1} parent=23 // pred_check
          %p117 = pneg %p39
        $region26: #{fold.1} parent=23 // pred_check_branch
          %119 = sbr.rel (%p117) target = $region28
        $region27: #{fold.1} parent=23 // pred_region
          %120 = dma.done %s113, 2304
        $region28: #{fold.1} parent=23 // pred_fallthru
          _
        %s121 = sand.u32 %s26, 1
        %s122 = scalar_lea.sflag [#allocation4], %s121
        %s123 = sand.u32 %s26, 1
        %s124 = smul.addr %s123, 144
        %s125 = scalar_lea.vmem [#allocation3], %s124
        %p126 = pneg %p39
        %p127 = pneg %p36
        %p128 = pneg %p65
        %p129 = pneg %p62
        %s130 = sand.u32 %s52, 1
        %s131 = scalar_lea.sflag [#allocation5], %s130
        %s132 = sand.u32 %s52, 1
        %s133 = smul.addr %s132, 16
        %s134 = scalar_lea.vmem [#allocation6], %s133
        %vm135 = vcmask 146432
        %136 = vst.msk [vmem:[#allocation2] sm:$0xff] %vm135, 0.0
        %137 = vst.msk [vmem:[#allocation2 + $0x8] sm:$0xff] %vm135, 0.0
        %vm138 = vcmask 140288
        %139 = vst.msk [vmem:[#allocation2 + $0x10] sm:$0x3] %vm138, 0.0
        %v140 = vld [vmem:[#allocation2] sm:$0xff]
        %v141 = vld [vmem:[#allocation2 + $0x8] sm:$0xff]
        %v142 = vld [vmem:[%s116] sm:$0xff]
        %v143 = vld [vmem:[%s116 + $0x8] sm:$0xff]
        %v144 = vadd.f32 %v140, %v142
        %v145 = vadd.f32 %v141, %v143
        %vm146 = vcmask 130048
        %147 = vst.msk [vmem:[#allocation2] sm:$0xff] %vm146, %v144
        %148 = vst.msk [vmem:[#allocation2 + $0x8] sm:$0xff] %vm146, %v145
        %v149 = vld [vmem:[#allocation2] sm:$0xff]
        %v150 = vld [vmem:[#allocation2 + $0x8] sm:$0xff]
        %s151 = scalar_lea.vmem %s116, 16 [#allocation3]
        %v152 = vld [vmem:[%s151] sm:$0xff]
        %v153 = vld [vmem:[%s151 + $0x8] sm:$0xff]
        %156 = vrot.lane.b32.xlu0 %v152, 1
        %v157 = vpop.permute.xlu0 %156
        %158 = vrot.lane.b32.xlu0 %v153, 1
        %v159 = vpop.permute.xlu0 %158
        %v162 = vadd.f32 %v149, %v157
        %v163 = vadd.f32 %v150, %v159
        %vm164 = vcmask 138248
        %165 = vst.msk [vmem:[#allocation2] sm:$0xff] %vm164, %v162
        %166 = vst.msk [vmem:[#allocation2 + $0x8] sm:$0xff] %vm164, %v163
        %v167 = vld [vmem:[#allocation2] sm:$0xff]
        %v168 = vld [vmem:[#allocation2 + $0x8] sm:$0xff]
        %s169 = scalar_lea.vmem %s116, 32 [#allocation3]
        %v170 = vld [vmem:[%s169] sm:$0xff]
        %v171 = vld [vmem:[%s169 + $0x8] sm:$0xff]
        %174 = vrot.lane.b32.xlu0 %v170, 2
        %v175 = vpop.permute.xlu0 %174
        %176 = vrot.lane.b32.xlu0 %v171, 2
        %v177 = vpop.permute.xlu0 %176
        %v180 = vadd.f32 %v167, %v175
        %v181 = vadd.f32 %v168, %v177
        %vm182 = vcmask 146448
        %183 = vst.msk [vmem:[#allocation2] sm:$0xff] %vm182, %v180
        %184 = vst.msk [vmem:[#allocation2 + $0x8] sm:$0xff] %vm182, %v181
        %v185 = vld [vmem:[#allocation2 + $0x1] sm:$0xff]
        %v186 = vld [vmem:[#allocation2 + $0x9] sm:$0xff]
        %s187 = scalar_lea.vmem %s116, 48 [#allocation3]
        %v188 = vld [vmem:[%s187] sm:$0xff]
        %v189 = vld [vmem:[%s187 + $0x8] sm:$0xff]
        %v190 = vadd.f32 %v185, %v188
        %v191 = vadd.f32 %v186, %v189
        %192 = vst.msk [vmem:[#allocation2 + $0x1] sm:$0xff] %vm146, %v190
        %193 = vst.msk [vmem:[#allocation2 + $0x9] sm:$0xff] %vm146, %v191
        %v194 = vld [vmem:[#allocation2 + $0x1] sm:$0xff]
        %v195 = vld [vmem:[#allocation2 + $0x9] sm:$0xff]
        %s196 = scalar_lea.vmem %s116, 64 [#allocation3]
        %v197 = vld [vmem:[%s196] sm:$0xff]
        %v198 = vld [vmem:[%s196 + $0x8] sm:$0xff]
        %201 = vrot.lane.b32.xlu0 %v197, 1
        %v202 = vpop.permute.xlu0 %201
        %203 = vrot.lane.b32.xlu0 %v198, 1
        %v204 = vpop.permute.xlu0 %203
        %v207 = vadd.f32 %v194, %v202
        %v208 = vadd.f32 %v195, %v204
        %209 = vst.msk [vmem:[#allocation2 + $0x1] sm:$0xff] %vm164, %v207
        %210 = vst.msk [vmem:[#allocation2 + $0x9] sm:$0xff] %vm164, %v208
        %v211 = vld [vmem:[#allocation2 + $0x1] sm:$0xff]
        %v212 = vld [vmem:[#allocation2 + $0x9] sm:$0xff]
        %s213 = scalar_lea.vmem %s116, 80 [#allocation3]
        %v214 = vld [vmem:[%s213] sm:$0xff]
        %v215 = vld [vmem:[%s213 + $0x8] sm:$0xff]
        %218 = vrot.lane.b32.xlu0 %v214, 2
        %v219 = vpop.permute.xlu0 %218
        %220 = vrot.lane.b32.xlu0 %v215, 2
        %v221 = vpop.permute.xlu0 %220
        %v224 = vadd.f32 %v211, %v219
        %v225 = vadd.f32 %v212, %v221
        %226 = vst.msk [vmem:[#allocation2 + $0x1] sm:$0xff] %vm182, %v224
        %227 = vst.msk [vmem:[#allocation2 + $0x9] sm:$0xff] %vm182, %v225
        %v228 = vld [vmem:[#allocation2 + $0x2] sm:$0xff]
        %v229 = vld [vmem:[#allocation2 + $0xa] sm:$0xff]
        %s230 = scalar_lea.vmem %s116, 96 [#allocation3]
        %v231 = vld [vmem:[%s230] sm:$0xff]
        %v232 = vld [vmem:[%s230 + $0x8] sm:$0xff]
        %v233 = vadd.f32 %v228, %v231
        %v234 = vadd.f32 %v229, %v232
        %235 = vst.msk [vmem:[#allocation2 + $0x2] sm:$0xff] %vm146, %v233
        %236 = vst.msk [vmem:[#allocation2 + $0xa] sm:$0xff] %vm146, %v234
        %v237 = vld [vmem:[#allocation2 + $0x2] sm:$0xff]
        %v238 = vld [vmem:[#allocation2 + $0xa] sm:$0xff]
        %s239 = scalar_lea.vmem %s116, 112 [#allocation3]
        %v240 = vld [vmem:[%s239] sm:$0xff]
        %v241 = vld [vmem:[%s239 + $0x8] sm:$0xff]
        %244 = vrot.lane.b32.xlu0 %v240, 1
        %v245 = vpop.permute.xlu0 %244
        %246 = vrot.lane.b32.xlu0 %v241, 1
        %v247 = vpop.permute.xlu0 %246
        %v250 = vadd.f32 %v237, %v245
        %v251 = vadd.f32 %v238, %v247
        %252 = vst.msk [vmem:[#allocation2 + $0x2] sm:$0xff] %vm164, %v250
        %253 = vst.msk [vmem:[#allocation2 + $0xa] sm:$0xff] %vm164, %v251
        %v254 = vld [vmem:[#allocation2 + $0x2] sm:$0xff]
        %v255 = vld [vmem:[#allocation2 + $0xa] sm:$0xff]
        %s256 = scalar_lea.vmem %s116, 128 [#allocation3]
        %v257 = vld [vmem:[%s256] sm:$0xff]
        %v258 = vld [vmem:[%s256 + $0x8] sm:$0xff]
        %261 = vrot.lane.b32.xlu0 %v257, 2
        %v262 = vpop.permute.xlu0 %261
        %263 = vrot.lane.b32.xlu0 %v258, 2
        %v264 = vpop.permute.xlu0 %263
        %v267 = vadd.f32 %v254, %v262
        %v268 = vadd.f32 %v255, %v264
        %269 = vst.msk [vmem:[#allocation2 + $0x2] sm:$0xff] %vm182, %v267
        %270 = vst.msk [vmem:[#allocation2 + $0xa] sm:$0xff] %vm182, %v268
        %v271 = vld [vmem:[#allocation2 + $0x1] sm:$0xff]
        %v272 = vld [vmem:[#allocation2 + $0x9] sm:$0xff]
        %275 = vrot.lane.b32.xlu0 %v271, 127
        %v276 = vpop.permute.xlu0 %275
        %277 = vrot.lane.b32.xlu0 %v272, 127
        %v278 = vpop.permute.xlu0 %277
        %281 = vst.msk [vmem:[%s134] sm:$0xff] %vm146, %v276
        %282 = vst.msk [vmem:[%s134 + $0x8] sm:$0xff] %vm146, %v278
        %s283 = sand.u32 %s52, 1
        %s284 = scalar_lea.sflag [#allocation5], %s283
        %s285 = sand.u32 %s52, 1
        %s286 = smul.addr %s285, 16
        %s287 = scalar_lea.vmem [#allocation6], %s286
        // Predicated region
        $region29: #{fold.1} parent=23 // pred_check
          %p288 = pneg %p62
        $region30: #{fold.1} parent=23 // pred_check_branch
          %290 = sbr.rel (%p288) target = $region32
        $region31: #{fold.1} parent=23 // pred_region
          %s292 = ssub.s32 256, 256
          %293 = vsyncadd %s284, %s292
          %s294 = smul.addr %s18, 2
          %s295 = smul.addr %s294, 128
          %s296 = scalar_lea.hbm %s1, %s295
          %s297 = sshll.u32 %s287, 4
          %s298 = int_to_ptr.vmem [resolvable:$true] %s297
          %303 = dma.vmem_to_hbm [thread:$0]  %s298, 256, %s296, %s284, 128, 128, 8
        $region32: #{fold.1} parent=23 // pred_fallthru
          _
      $region24: #{fold.1} parent=5 // pred_fallthru
        _
      %p304 = scmp.le.s32.totalorder 2, %s13
      // Predicated region
      $region33: #{fold.1} parent=5 // pred_check
        %p305 = pneg %p304
      $region34: #{fold.1} parent=5 // pred_check_branch
        %307 = sbr.rel (%p305) target = $region36
      $region35: #{fold.1} parent=5 // pred_region
        %s308 = ssub.s32 %s13, 2
        // Predicated region
        $region37: #{fold.1} parent=35 // pred_check
          %p309 = pneg %p68
        $region38: #{fold.1} parent=35 // pred_check_branch
          %311 = sbr.rel (%p309) target = $region40
        $region39: #{fold.1} parent=35 // pred_region
          %s312 = sand.u32 %s53, 1
          %s313 = scalar_lea.sflag [#allocation5], %s312
          %s314 = sand.u32 %s53, 1
          %s315 = smul.addr %s314, 16
          %s316 = scalar_lea.vmem [#allocation6], %s315
          %317 = dma.done %s313, 256
        $region40: #{fold.1} parent=35 // pred_fallthru
          _
      $region36: #{fold.1} parent=5 // pred_fallthru
        _
    $region6: #{fold.1} parent=1 // loop_footer
      %s17 = sadd.s32 1, %s13
    $region7: #{fold.1} parent=1 // loop_footer_branch
      %12 = sbr.rel target = $region3
    $region8: #{fold.1} parent=1 // loop_exit
      _
    %318 = vsyncpa [#allocation4], 1
    %s319 = scalar_lea.sflag [#allocation4], 1
    %320 = vsyncpa %s319, 1
    %321 = vsyncpa [#allocation5], 1
    %s322 = scalar_lea.sflag [#allocation5], 1
    %323 = vsyncpa %s322, 1

</llo_original>
